<compile_context>
chip_gen: v7x
topology: tpu7x:2x2x1
jax: 0.10.0
libtpu: 0.0.40
codegen_flags: <defaults>
</compile_context>

<pallas_src>
import jax
import jax.numpy as jnp
from jax import lax
from jax.experimental import pallas as pl
from jax.experimental.pallas import tpu as pltpu


# ----------------------------- Pass 1: attention -----------------------------

def _attention_kernel(tok_ref, pos_ref, wqkv_ref, attn_ref):
    # tok_ref:  (1, T, C) bf16    pos_ref: (T, C) bf16
    # wqkv_ref: (C, 3H)   bf16    attn_ref: (1, T, C) bf16 (output)
    x = tok_ref[0] + pos_ref[...]                          # (T, C) bf16 VPU add
    three_h = wqkv_ref.shape[1]
    h = three_h // 3

    # Fused q/k/v projection: one MXU matmul, f32 accumulation.
    qkv = jnp.dot(x, wqkv_ref[...],
                  preferred_element_type=jnp.float32)      # (T, 3H) f32
    k = qkv[:, 0:h].astype(jnp.bfloat16)
    q = qkv[:, h:2 * h].astype(jnp.bfloat16)
    v = qkv[:, 2 * h:three_h].astype(jnp.bfloat16)

    scale = jnp.float32(h) ** -0.5
    # q @ k^T without materializing k.T: contract on the head dimension.
    wei = lax.dot_general(
        q, k, dimension_numbers=(((1,), (1,)), ((), ())),
        preferred_element_type=jnp.float32) * scale        # (T, T) f32

    t = wei.shape[0]
    row = lax.broadcasted_iota(jnp.int32, (t, t), 0)
    col = lax.broadcasted_iota(jnp.int32, (t, t), 1)
    wei = jnp.where(row >= col, wei, -jnp.inf)             # causal mask

    # Numerically-stable softmax; the diagonal is always unmasked so the
    # row max is finite and no 0/0 can occur.
    wei = jnp.exp(wei - jnp.max(wei, axis=-1, keepdims=True))
    denom = jnp.sum(wei, axis=-1, keepdims=True)
    wei = wei * pl.reciprocal(denom, approx=True)          # EUP slot

    attn = jnp.dot(wei.astype(jnp.bfloat16), v,
                   preferred_element_type=jnp.float32)     # (T, H=C) f32
    attn_ref[0] = attn.astype(attn_ref.dtype)


# ------------------------------ Pass 2: lm_head ------------------------------

def _lm_head_kernel(x_ref, w_ref, b_ref, out_ref):
    # x_ref: (tm, C) bf16   w_ref: (C, tv) bf16   b_ref: (1, tv) f32
    # out_ref: (tm, tv) logits_dtype
    out = jnp.dot(x_ref[...], w_ref[...],
                  preferred_element_type=jnp.float32) + b_ref[...]
    out_ref[...] = out.astype(out_ref.dtype)


# --------------------------------- wrapper -----------------------------------

def prepare_params(params, *, tv=512):
    """One-time weight preprocessing (hoisted out of the per-forward path)."""
    assert tv % 128 == 0, "vocab tile must be lane-dense (multiple of 128)"
    C = params["tok_emb"].shape[1]
    V = params["wlm"].shape[1]
    v_pad = tv * pl.cdiv(V, tv)          # pad vocab to a multiple of the tile

    wqkv = jnp.concatenate(
        [params["wk"], params["wq"], params["wv"]], axis=1).astype(jnp.bfloat16)
    wlm_p = jnp.zeros((C, v_pad), jnp.bfloat16).at[:, :V].set(
        params["wlm"].astype(jnp.bfloat16))
    blm_p = jnp.zeros((1, v_pad), jnp.float32).at[:, :V].set(
        params["blm"].astype(jnp.float32))

    return {
        "tok_emb": params["tok_emb"].astype(jnp.bfloat16),   # (V, C)
        "pos_emb": params["pos_emb"].astype(jnp.bfloat16),   # (block_size, C)
        "wqkv": wqkv,                                        # (C, 3C)
        "wlm_p": wlm_p,                                      # (C, v_pad)
        "blm_p": blm_p,                                      # (1, v_pad)
        "vocab_size": V,
        "tv": tv,
    }


def self_attention_lm_forward(idx, prepared, *, logits_dtype=jnp.float32):
    """Forward of SelfAttentionLanguageModel (targets=None path -> loss=None)."""
    tok_table = prepared["tok_emb"]
    pos_table = prepared["pos_emb"]
    wqkv = prepared["wqkv"]
    wlm_p = prepared["wlm_p"]
    blm_p = prepared["blm_p"]
    V = prepared["vocab_size"]
    tv = prepared["tv"]

    B, T = idx.shape
    C = tok_table.shape[1]
    three_h = wqkv.shape[1]
    v_pad = wlm_p.shape[1]
    nv = v_pad // tv

    # --- glue: embedding gather stays in XLA (data-dependent gather) ---------
    # TODO(synk): the token-embedding gather could move in-kernel via
    # scalar-prefetch idx + pl.Element row gather; kept in XLA glue here.
    tok_emb = tok_table[idx]                  # (B, T, C) bf16
    pos_emb = pos_table[:T]                   # (T, C)    bf16

    # Pad T to a bf16-sublane-friendly multiple of 16 only when needed.
    t_pad = 16 * pl.cdiv(T, 16)
    if t_pad != T:
        tok_emb = jnp.pad(tok_emb, ((0, 0), (0, t_pad - T), (0, 0)))
        pos_emb = jnp.pad(pos_emb, ((0, t_pad - T), (0, 0)))

    # --- pass 1: per-batch causal self-attention -----------------------------
    attn = pl.pallas_call(
        _attention_kernel,
        out_shape=jax.ShapeDtypeStruct((B, t_pad, C), jnp.bfloat16),
        grid_spec=pltpu.PrefetchScalarGridSpec(
            num_scalar_prefetch=0,
            grid=(B,),
            in_specs=[
                pl.BlockSpec((1, t_pad, C), lambda b: (b, 0, 0)),   # tok_emb
                pl.BlockSpec((t_pad, C), lambda b: (0, 0)),         # pos_emb
                pl.BlockSpec((C, three_h), lambda b: (0, 0)),       # wqkv
            ],
            out_specs=pl.BlockSpec((1, t_pad, C), lambda b: (b, 0, 0)),
        ),
        compiler_params=pltpu.CompilerParams(
            dimension_semantics=("parallel",)),
    )(tok_emb, pos_emb, wqkv)

    # --- pass 2: lm_head over the flattened (B*T, C) slab ---------------------
    M = B * t_pad
    attn_flat = attn.reshape(M, C)            # contiguous reshape (no copy)

    # Largest M tile <= 256 that divides M (M is always a multiple of 16).
    if M <= 256:
        tm = M
    else:
        tm = next(c for c in (256, 128, 64, 32, 16) if M % c == 0)
    nm = M // tm

    logits_flat = pl.pallas_call(
        _lm_head_kernel,
        out_shape=jax.ShapeDtypeStruct((M, v_pad), logits_dtype),
        grid_spec=pltpu.PrefetchScalarGridSpec(
            num_scalar_prefetch=0,
            # Vocab axis OUTER: the wlm block index is constant across the
            # inner M axis, so each (C, tv) weight tile streams from HBM
            # exactly once.  The small (tm, C) activation tile is the one
            # that gets revisited (nv times) instead of the big weight.
            grid=(nv, nm),
            in_specs=[
                pl.BlockSpec((tm, C), lambda j, i: (i, 0)),     # activations
                pl.BlockSpec((C, tv), lambda j, i: (0, j)),     # wlm tile
                pl.BlockSpec((1, tv), lambda j, i: (0, j)),     # bias tile
            ],
            out_specs=pl.BlockSpec((tm, tv), lambda j, i: (i, j)),
        ),
        compiler_params=pltpu.CompilerParams(
            dimension_semantics=("parallel", "parallel")),
    )(attn_flat, wlm_p, blm_p)

    logits = logits_flat.reshape(B, t_pad, v_pad)
    if t_pad != T or v_pad != V:
        # Only paid when the shapes force padding; the demo below is
        # padding-free so this copy never happens there.
        logits = logits[:, :T, :V]

    loss = None                     # targets=None path of the reference module
    return logits, loss


# ----------------------------- reference & demo ------------------------------

def init_params(key, vocab_size, block_size, n_embd):
    head_size = n_embd  # SelfAttenion(n_embd) in the reference model
    ks = jax.random.split(key, 7)
    s = 1.0 / jnp.sqrt(jnp.float32(n_embd))
    return {
        "tok_emb": jax.random.normal(ks[0], (vocab_size, n_embd), jnp.float32),
        "pos_emb": jax.random.normal(ks[1], (block_size, n_embd), jnp.float32),
        "wk": jax.random.normal(ks[2], (n_embd, head_size), jnp.float32) * s,
        "wq": jax.random.normal(ks[3], (n_embd, head_size), jnp.float32) * s,
        "wv": jax.random.normal(ks[4], (n_embd, head_size), jnp.float32) * s,
        "wlm": jax.random.normal(ks[5], (n_embd, vocab_size), jnp.float32) * s,
        "blm": jax.random.normal(ks[6], (1, vocab_size), jnp.float32) * 0.01,
    }


def _reference_forward(idx, params):
    """Pure-JAX f32 reference of the PyTorch forward (targets=None)."""
    x = params["tok_emb"][idx] + params["pos_emb"][: idx.shape[1]][None]
    k = x @ params["wk"]
    q = x @ params["wq"]
    v = x @ params["wv"]
    T = x.shape[1]
    wei = jnp.einsum("bqh,bkh->bqk", q, k) * (params["wk"].shape[1] ** -0.5)
    mask = jnp.tril(jnp.ones((T, T), dtype=bool))
    wei = jnp.where(mask[None], wei, -jnp.inf)
    wei = jax.nn.softmax(wei, axis=-1)
    out = jnp.einsum("bqk,bkh->bqh", wei, v)
    return out @ params["wlm"] + params["blm"]


if __name__ == "__main__":
    # Small shapes consistent with the module's forward (head_size == n_embd).
    # vocab_size=512 with tv=128 exercises 4 vocab tiles with no padding (so
    # no post-kernel slice); B=2, T=16 -> flattened lm_head M of 32 rows.
    B, T = 2, 16
    n_embd = 128
    vocab_size = 512
    block_size = 32

    key = jax.random.PRNGKey(0)
    pkey, ikey = jax.random.split(key)
    params = init_params(pkey, vocab_size, block_size, n_embd)
    idx = jax.random.randint(ikey, (B, T), 0, vocab_size, dtype=jnp.int32)

    # One-time weight preprocessing (cached across forward calls).
    prepared = prepare_params(params, tv=128)

    logits, loss = self_attention_lm_forward(idx, prepared)
    logits = jax.block_until_ready(logits)

    assert logits.shape == (B, T, vocab_size)
    assert loss is None
    assert bool(jnp.all(jnp.isfinite(logits)))

    # Loose check against the f32 reference (kernel uses bf16 MXU operands).
    ref = _reference_forward(idx, params)
    max_err = float(jnp.max(jnp.abs(logits - ref)))
    assert max_err < 0.5, f"kernel deviates from reference: max_err={max_err}"

    print("KERNEL_OK")
</pallas_src>

<mosaic_0001>
module attributes {stable_mosaic.version = 11 : i64} {
  func.func @_attention_kernel(%arg0: i32, %arg1: memref<1x16x128xbf16, #tpu.memory_space<vmem>>, %arg2: memref<16x128xbf16, #tpu.memory_space<vmem>>, %arg3: memref<128x384xbf16, #tpu.memory_space<vmem>>, %arg4: memref<1x16x128xbf16, #tpu.memory_space<vmem>>) attributes {dimension_semantics = [#tpu.dimension_semantics<parallel>], iteration_bounds = array<i64: 2>, scalar_prefetch = 0 : i64, scratch_operands = 0 : i64, tpu.core_type = #tpu.core_type<tc>, window_params = [{transform_indices = @transform_0, window_bounds = array<i64: 1, 16, 128>}, {pipeline_mode = #tpu.pipeline_mode<synchronous>, transform_indices = @transform_1, window_bounds = array<i64: 16, 128>}, {pipeline_mode = #tpu.pipeline_mode<synchronous>, transform_indices = @transform_2, window_bounds = array<i64: 128, 384>}, {transform_indices = @transform_3, window_bounds = array<i64: 1, 16, 128>}]} {
    %c0 = arith.constant 0 : index
    %c0_0 = arith.constant 0 : index
    %c0_1 = arith.constant 0 : index
    %0 = vector.load %arg1[%c0, %c0_0, %c0_1] : memref<1x16x128xbf16, #tpu.memory_space<vmem>>, vector<1x16x128xbf16>
    %1 = vector.shape_cast %0 : vector<1x16x128xbf16> to vector<16x128xbf16>
    %c0_2 = arith.constant 0 : index
    %c0_3 = arith.constant 0 : index
    %2 = vector.load %arg2[%c0_2, %c0_3] : memref<16x128xbf16, #tpu.memory_space<vmem>>, vector<16x128xbf16>
    %3 = arith.addf %1, %2 : vector<16x128xbf16>
    %c0_4 = arith.constant 0 : index
    %c0_5 = arith.constant 0 : index
    %4 = vector.load %arg3[%c0_4, %c0_5] : memref<128x384xbf16, #tpu.memory_space<vmem>>, vector<128x384xbf16>
    %cst = arith.constant dense<0.000000e+00> : vector<16x384xf32>
    %5 = tpu.matmul %3, %4, %cst {dimension_numbers = #tpu.dot_dimension_numbers<[1], [0], [0], [1], [0, 0, 1, 1], [], []>} : vector<16x128xbf16>, vector<128x384xbf16>, vector<16x384xf32> -> vector<16x384xf32>
    %6 = vector.extract_strided_slice %5 {offsets = [0, 0], sizes = [16, 128], strides = [1, 1]} : vector<16x384xf32> to vector<16x128xf32>
    %7 = arith.truncf %6 : vector<16x128xf32> to vector<16x128xbf16>
    %8 = vector.extract_strided_slice %5 {offsets = [0, 128], sizes = [16, 128], strides = [1, 1]} : vector<16x384xf32> to vector<16x128xf32>
    %9 = arith.truncf %8 : vector<16x128xf32> to vector<16x128xbf16>
    %10 = vector.extract_strided_slice %5 {offsets = [0, 256], sizes = [16, 128], strides = [1, 1]} : vector<16x384xf32> to vector<16x128xf32>
    %11 = arith.truncf %10 : vector<16x128xf32> to vector<16x128xbf16>
    %cst_6 = arith.constant 1.280000e+02 : f32
    %cst_7 = arith.constant -5.000000e-01 : f32
    %12 = math.powf %cst_6, %cst_7 : f32
    %cst_8 = arith.constant dense<0.000000e+00> : vector<16x16xf32>
    %13 = tpu.matmul %9, %7, %cst_8 {dimension_numbers = #tpu.dot_dimension_numbers<[1], [1], [0], [0], [0, 0, 1, 0], [], []>} : vector<16x128xbf16>, vector<16x128xbf16>, vector<16x16xf32> -> vector<16x16xf32>
    %14 = vector.broadcast %12 : f32 to vector<16x16xf32>
    %15 = arith.mulf %13, %14 : vector<16x16xf32>
    %16 = tpu.iota {dimensions = array<i32: 0>} : vector<16x16xi32>
    %17 = tpu.iota {dimensions = array<i32: 1>} : vector<16x16xi32>
    %18 = arith.cmpi sge, %16, %17 : vector<16x16xi32>
    %cst_9 = arith.constant 0xFF800000 : f32
    %19 = vector.broadcast %cst_9 : f32 to vector<16x16xf32>
    %20 = arith.select %18, %15, %19 : vector<16x16xi1>, vector<16x16xf32>
    %cst_10 = arith.constant dense<0xFF800000> : vector<16xf32>
    %21 = vector.multi_reduction <maximumf>, %20, %cst_10 [1] : vector<16x16xf32> to vector<16xf32>
    %22 = vector.shape_cast %21 : vector<16xf32> to vector<16x1xf32>
    %23 = vector.broadcast %22 : vector<16x1xf32> to vector<16x16xf32>
    %24 = arith.subf %20, %23 : vector<16x16xf32>
    %25 = math.exp %24 : vector<16x16xf32>
    %cst_11 = arith.constant dense<0.000000e+00> : vector<16xf32>
    %26 = vector.multi_reduction <add>, %25, %cst_11 [1] : vector<16x16xf32> to vector<16xf32>
    %27 = vector.shape_cast %26 : vector<16xf32> to vector<16x1xf32>
    %28 = tpu.reciprocal %27 {approx = true} : vector<16x1xf32> -> vector<16x1xf32>
    %29 = vector.broadcast %28 : vector<16x1xf32> to vector<16x16xf32>
    %30 = arith.mulf %25, %29 : vector<16x16xf32>
    %31 = arith.truncf %30 : vector<16x16xf32> to vector<16x16xbf16>
    %cst_12 = arith.constant dense<0.000000e+00> : vector<16x128xf32>
    %32 = tpu.matmul %31, %11, %cst_12 {dimension_numbers = #tpu.dot_dimension_numbers<[1], [0], [0], [1], [0, 0, 1, 1], [], []>} : vector<16x16xbf16>, vector<16x128xbf16>, vector<16x128xf32> -> vector<16x128xf32>
    %33 = arith.truncf %32 : vector<16x128xf32> to vector<16x128xbf16>
    %c0_13 = arith.constant 0 : index
    %c0_14 = arith.constant 0 : index
    %c0_15 = arith.constant 0 : index
    %34 = vector.load %arg4[%c0_13, %c0_14, %c0_15] : memref<1x16x128xbf16, #tpu.memory_space<vmem>>, vector<1x16x128xbf16>
    %35 = vector.shape_cast %34 : vector<1x16x128xbf16> to vector<16x128xbf16>
    %36 = vector.shape_cast %33 : vector<16x128xbf16> to vector<1x16x128xbf16>
    tpu.vector_store %arg4[%c0_13, %c0_14, %c0_15], %36 {strides = array<i32>} : memref<1x16x128xbf16, #tpu.memory_space<vmem>>, vector<1x16x128xbf16>,
    return
  }
  func.func @transform_0(%arg0: i32) -> (i32, i32, i32) {
    %c0_i32 = arith.constant 0 : i32
    %c0_i32_0 = arith.constant 0 : i32
    %c0_i32_1 = arith.constant 0 : i32
    return %arg0, %c0_i32, %c0_i32_0 : i32, i32, i32
  }
  func.func @transform_1(%arg0: i32) -> (i32, i32) {
    %c0_i32 = arith.constant 0 : i32
    %c0_i32_0 = arith.constant 0 : i32
    %c0_i32_1 = arith.constant 0 : i32
    return %c0_i32, %c0_i32_0 : i32, i32
  }
  func.func @transform_2(%arg0: i32) -> (i32, i32) {
    %c0_i32 = arith.constant 0 : i32
    %c0_i32_0 = arith.constant 0 : i32
    %c0_i32_1 = arith.constant 0 : i32
    return %c0_i32, %c0_i32_0 : i32, i32
  }
  func.func @transform_3(%arg0: i32) -> (i32, i32, i32) {
    %c0_i32 = arith.constant 0 : i32
    %c0_i32_0 = arith.constant 0 : i32
    %c0_i32_1 = arith.constant 0 : i32
    return %arg0, %c0_i32, %c0_i32_0 : i32, i32, i32
  }
}

</mosaic_0001>

<llo_original>
// kernel: tpu_custom_call.1
$region0: #{tpu_custom_call.1}
  #allocation0 [shape = 'u32[]', space=smem, size = 0x4, offset = 0x4, fixed_abs, tag = 'smem constant byte address 0x4 - core index']
  #allocation1 [shape = 'u32[144,128]{1,0:T(1,128)}', space=vmem, size = 0x12000, scoped, tag = 'internal scratch']
  %s0 = inlined_call_operand.hbm [shape: bf16[2,16,128], index: 0, kind: input, shape index: {}]
  %s1 = inlined_call_operand.hbm [shape: bf16[16,128], index: 1, kind: input, shape index: {}]
  %s2 = inlined_call_operand.hbm [shape: bf16[128,384], index: 2, kind: input, shape index: {}]
  %s3 = inlined_call_operand.hbm [shape: bf16[2,16,128], index: 3, kind: output, shape index: {}]
  %s4 = sld [smem:[#allocation0]]
  $region57: #{tpu_custom_call.1} parent=0
    _
  %s6 = ssub.s32 1, %s4
  %s7 = scalar_select 0, %s6, %s4
  $region1: #{tpu_custom_call.1} parent=0
    #allocation2 [shape = 'u8[8192]{0}', space=vmem, size = 0x2000, scoped, tag = 'input window, operand 0']
    #allocation3 [shape = 's32[2]{0}', space=sflag, size = 0x8, scoped, tag = 'scoped memory for tpu_custom_call.1']
    #allocation4 [shape = 's32[2]{0}', space=sflag, size = 0x8, scoped, tag = 'scoped memory for tpu_custom_call.1']
    #allocation5 [shape = 'u8[4096]{0}', space=vmem, size = 0x1000, scoped, tag = 'input window, operand 1, single buffered']
    #allocation6 [shape = 's32[1]{0}', space=sflag, size = 0x4, scoped, tag = 'scoped memory for tpu_custom_call.1']
    #allocation7 [shape = 'u8[98304]{0}', space=vmem, size = 0x18000, scoped, tag = 'input window, operand 2, single buffered']
    #allocation8 [shape = 'u8[8192]{0}', space=vmem, size = 0x2000, scoped, tag = 'output window, operand 0']
    %8 = vsyncpa [#allocation3], 0
    %s9 = scalar_lea.sflag [#allocation3], 1
    %10 = vsyncpa %s9, 0
    %11 = vsyncpa [#allocation6], 0
    %12 = vsyncpa [#allocation4], 0
    %s13 = scalar_lea.sflag [#allocation4], 1
    %14 = vsyncpa %s13, 0
    loop: start=0, step=1, limit=4
    $region2: #{tpu_custom_call.1} parent=1 // loop_pre_header
      _
    $region3: #{tpu_custom_call.1} parent=1 // loop_header
      %s16 = sphi 0, %s20
      %p17 = scmp.ge.s32.totalorder %s16, 4
      %s26 = sphi 0, %s28
      %s29 = sphi 0, %s26
      %s30 = sphi 0, %s29
      %s46 = sphi 0, %s30
      %s50 = sphi 0, %s50
      %s52 = sphi 0, %s50
      %s53 = sphi 0, %s52
      %s67 = sphi 0, %s53
      %s71 = sphi 0, %s71
      %s73 = sphi 0, %s71
      %s74 = sphi 0, %s73
      %s88 = sphi 0, %s74
      %s94 = sphi 0, %s96
      %s97 = sphi 0, %s94
      %s98 = sphi 0, %s97
      %s114 = sphi 0, %s98
    $region4: #{tpu_custom_call.1} parent=1 // loop_header_branch
      %19 = sbr.rel (%p17) target = $region8
    $region5: #{tpu_custom_call.1} parent=1 // loop_body
      %s21 = ssub.s32 %s16, 1
      %s22 = ssub.s32 %s16, 2
      %s23 = sadd.s32 %s16, 1
      %s24 = ssub.s32 %s16, %s23
      %p25 = scmp.eq.s32.totalorder %s24, 0
      %s27 = sadd.s32 %s26, 1
      %s28 = scalar_select %p25, %s26, %s27
      %p31 = pneg %p25
      %p32 = scmp.eq.s32.totalorder %s16, 1
      %p33 = por %p31, %p32
      %p34 = scmp.ne.s32.totalorder %s26, %s29
      %p35 = scmp.eq.s32.totalorder %s16, 0
      %p36 = por %p34, %p35
      %p37 = scmp.ne.s32.totalorder %s26, %s29
      %p38 = scmp.eq.s32.totalorder %s21, 1
      %p39 = por %p37, %p38
      %p40 = scmp.ne.s32.totalorder %s29, %s30
      %p41 = scmp.eq.s32.totalorder %s21, 0
      %p42 = por %p40, %p41
      %p43 = scmp.ne.s32.totalorder %s29, %s30
      %p44 = scmp.eq.s32.totalorder %s22, 1
      %p45 = por %p43, %p44
      %p47 = scmp.ne.s32.totalorder %s30, %s46
      %p48 = scmp.eq.s32.totalorder %s22, 0
      %p49 = por %p47, %p48
      %s51 = sadd.s32 %s50, 1
      %p54 = scmp.eq.s32.totalorder %s16, 1
      %p55 = scmp.ne.s32.totalorder %s50, %s52
      %p56 = scmp.eq.s32.totalorder %s16, 0
      %p57 = por %p55, %p56
      %p58 = scmp.ne.s32.totalorder %s50, %s52
      %p59 = scmp.eq.s32.totalorder %s21, 1
      %p60 = por %p58, %p59
      %p61 = scmp.ne.s32.totalorder %s52, %s53
      %p62 = scmp.eq.s32.totalorder %s21, 0
      %p63 = por %p61, %p62
      %p64 = scmp.ne.s32.totalorder %s52, %s53
      %p65 = scmp.eq.s32.totalorder %s22, 1
      %p66 = por %p64, %p65
      %p68 = scmp.ne.s32.totalorder %s53, %s67
      %p69 = scmp.eq.s32.totalorder %s22, 0
      %p70 = por %p68, %p69
      %s72 = sadd.s32 %s71, 1
      %p75 = scmp.eq.s32.totalorder %s16, 1
      %p76 = scmp.ne.s32.totalorder %s71, %s73
      %p77 = scmp.eq.s32.totalorder %s16, 0
      %p78 = por %p76, %p77
      %p79 = scmp.ne.s32.totalorder %s71, %s73
      %p80 = scmp.eq.s32.totalorder %s21, 1
      %p81 = por %p79, %p80
      %p82 = scmp.ne.s32.totalorder %s73, %s74
      %p83 = scmp.eq.s32.totalorder %s21, 0
      %p84 = por %p82, %p83
      %p85 = scmp.ne.s32.totalorder %s73, %s74
      %p86 = scmp.eq.s32.totalorder %s22, 1
      %p87 = por %p85, %p86
      %p89 = scmp.ne.s32.totalorder %s74, %s88
      %p90 = scmp.eq.s32.totalorder %s22, 0
      %p91 = por %p89, %p90
      %s92 = ssub.s32 %s16, %s23
      %p93 = scmp.eq.s32.totalorder %s92, 0
      %s95 = sadd.s32 %s94, 1
      %s96 = scalar_select %p93, %s94, %s95
      %p99 = pneg %p93
      %p100 = scmp.eq.s32.totalorder %s16, 1
      %p101 = por %p99, %p100
      %p102 = scmp.ne.s32.totalorder %s94, %s97
      %p103 = scmp.eq.s32.totalorder %s16, 0
      %p104 = por %p102, %p103
      %p105 = scmp.ne.s32.totalorder %s94, %s97
      %p106 = scmp.eq.s32.totalorder %s21, 1
      %p107 = por %p105, %p106
      %p108 = scmp.ne.s32.totalorder %s97, %s98
      %p109 = scmp.eq.s32.totalorder %s21, 0
      %p110 = por %p108, %p109
      %p111 = scmp.ne.s32.totalorder %s97, %s98
      %p112 = scmp.eq.s32.totalorder %s22, 1
      %p113 = por %p111, %p112
      %p115 = scmp.ne.s32.totalorder %s98, %s114
      %p116 = scmp.eq.s32.totalorder %s22, 0
      %p117 = por %p115, %p116
      %p118 = scmp.le.s32.totalorder 1, %s16
      %p119 = scmp.lt.s32.totalorder %s16, 3
      %p120 = pnand %p118, %p119
      %p121 = pneg %p120
      // Predicated region
      $region9: #{tpu_custom_call.1} parent=5 // pred_check
        _
      $region10: #{tpu_custom_call.1} parent=5 // pred_check_branch
        %123 = sbr.rel (%p120) target = $region12
      $region11: #{tpu_custom_call.1} parent=5 // pred_region
        %s124 = ssub.s32 %s16, 1
        // Predicated region
        $region13: #{tpu_custom_call.1} parent=11 // pred_check
          %p125 = pneg %p63
        $region14: #{tpu_custom_call.1} parent=11 // pred_check_branch
          %127 = sbr.rel (%p125) target = $region16
        $region15: #{tpu_custom_call.1} parent=11 // pred_region
          %s129 = ssub.s32 128, 128
          %130 = vsyncadd [#allocation6], %s129
          %s131 = sshll.u32 [#allocation5], 4
          %s132 = int_to_ptr.vmem [resolvable:$true] %s131
          %137 = dma.hbm_to_vmem [thread:$0]  %s1, 128, %s132, [#allocation6], 64, 64, 4
        $region16: #{tpu_custom_call.1} parent=11 // pred_fallthru
          _
        // Predicated region
        $region17: #{tpu_custom_call.1} parent=11 // pred_check
          %p138 = pneg %p84
        $region18: #{tpu_custom_call.1} parent=11 // pred_check_branch
          %140 = sbr.rel (%p138) target = $region20
        $region19: #{tpu_custom_call.1} parent=11 // pred_region
          %s142 = ssub.s32 3072, 3072
          %143 = vsyncadd [#allocation6], %s142
          %s144 = sshll.u32 [#allocation7], 4
          %s145 = int_to_ptr.vmem [resolvable:$true] %s144
          %150 = dma.hbm_to_vmem [thread:$0]  %s2, 3072, %s145, [#allocation6], 192, 192, 12
        $region20: #{tpu_custom_call.1} parent=11 // pred_fallthru
          _
      $region12: #{tpu_custom_call.1} parent=5 // pred_fallthru
        _
      %p151 = scmp.lt.s32.totalorder %s16, 2
      // Predicated region
      $region21: #{tpu_custom_call.1} parent=5 // pred_check
        %p152 = pneg %p151
      $region22: #{tpu_custom_call.1} parent=5 // pred_check_branch
        %154 = sbr.rel (%p152) target = $region24
      $region23: #{tpu_custom_call.1} parent=5 // pred_region
        // Predicated region
        $region25: #{tpu_custom_call.1} parent=23 // pred_check
          %p155 = pneg %p36
        $region26: #{tpu_custom_call.1} parent=23 // pred_check_branch
          %157 = sbr.rel (%p155) target = $region28
        $region27: #{tpu_custom_call.1} parent=23 // pred_region
          %s158 = sand.u32 %s26, 1
          %s159 = scalar_lea.sflag [#allocation3], %s158
          %s160 = sand.u32 %s26, 1
          %s161 = smul.addr %s160, 8
          %s162 = scalar_lea.vmem [#allocation2], %s161
          %s164 = ssub.s32 128, 128
          %165 = vsyncadd %s159, %s164
          %s166 = smul.addr %s16, 2
          %s167 = smul.addr %s166, 64
          %s168 = scalar_lea.hbm %s0, %s167
          %s169 = sshll.u32 %s162, 4
          %s170 = int_to_ptr.vmem [resolvable:$true] %s169
          %175 = dma.hbm_to_vmem [thread:$0]  %s168, 128, %s170, %s159, 64, 64, 4
        $region28: #{tpu_custom_call.1} parent=23 // pred_fallthru
          _
      $region24: #{tpu_custom_call.1} parent=5 // pred_fallthru
        _
      %p176 = scmp.le.s32.totalorder 1, %s16
      %p177 = scmp.lt.s32.totalorder %s16, 3
      %p178 = pnand %p176, %p177
      %p179 = pneg %p178
      // Predicated region
      $region29: #{tpu_custom_call.1} parent=5 // pred_check
        _
      $region30: #{tpu_custom_call.1} parent=5 // pred_check_branch
        %181 = sbr.rel (%p178) target = $region32
      $region31: #{tpu_custom_call.1} parent=5 // pred_region
        %s182 = ssub.s32 %s16, 1
        %s183 = sand.u32 %s29, 1
        %s184 = scalar_lea.sflag [#allocation3], %s183
        %s185 = sand.u32 %s29, 1
        %s186 = smul.addr %s185, 8
        %s187 = scalar_lea.vmem [#allocation2], %s186
        // Predicated region
        $region33: #{tpu_custom_call.1} parent=31 // pred_check
          %p188 = pneg %p42
        $region34: #{tpu_custom_call.1} parent=31 // pred_check_branch
          %190 = sbr.rel (%p188) target = $region36
        $region35: #{tpu_custom_call.1} parent=31 // pred_region
          %191 = dma.done %s184, 128
        $region36: #{tpu_custom_call.1} parent=31 // pred_fallthru
          _
        // Predicated region
        $region37: #{tpu_custom_call.1} parent=31 // pred_check
          %p192 = pneg %p63
        $region38: #{tpu_custom_call.1} parent=31 // pred_check_branch
          %194 = sbr.rel (%p192) target = $region40
        $region39: #{tpu_custom_call.1} parent=31 // pred_region
          %195 = dma.done [#allocation6], 128
        $region40: #{tpu_custom_call.1} parent=31 // pred_fallthru
          _
        // Predicated region
        $region41: #{tpu_custom_call.1} parent=31 // pred_check
          %p196 = pneg %p84
        $region42: #{tpu_custom_call.1} parent=31 // pred_check_branch
          %198 = sbr.rel (%p196) target = $region44
        $region43: #{tpu_custom_call.1} parent=31 // pred_region
          %199 = dma.done [#allocation6], 3072
        $region44: #{tpu_custom_call.1} parent=31 // pred_fallthru
          _
        %s200 = sand.u32 %s29, 1
        %s201 = scalar_lea.sflag [#allocation3], %s200
        %s202 = sand.u32 %s29, 1
        %s203 = smul.addr %s202, 8
        %s204 = scalar_lea.vmem [#allocation2], %s203
        %p205 = pneg %p42
        %p206 = pneg %p39
        %p207 = pneg %p63
        %p208 = pneg %p60
        %p209 = pneg %p84
        %p210 = pneg %p81
        %p211 = pneg %p110
        %p212 = pneg %p107
        %s213 = sand.u32 %s97, 1
        %s214 = scalar_lea.sflag [#allocation4], %s213
        %s215 = sand.u32 %s97, 1
        %s216 = smul.addr %s215, 8
        %s217 = scalar_lea.vmem [#allocation8], %s216
        %v219 = vld [vmem:[%s187] sm:$0xf]
        %v220 = vld [vmem:[%s187 + $0x4] sm:$0xf]
        %v221 = vld [vmem:[#allocation5] sm:$0xf]
        %v222 = vld [vmem:[#allocation5 + $0x4] sm:$0xf]
        %v223 = vadd.bf16 %v219, %v221
        %v224 = vadd.bf16 %v220, %v222
        %v225 = vld [vmem:[#allocation7] sm:$0xff]
        %v226 = vld [vmem:[#allocation7 + $0x8] sm:$0xf]
        %v227 = vld [vmem:[#allocation7 + $0xc] sm:$0xff]
        %v228 = vld [vmem:[#allocation7 + $0x14] sm:$0xf]
        %v229 = vld [vmem:[#allocation7 + $0x18] sm:$0xff]
        %v230 = vld [vmem:[#allocation7 + $0x20] sm:$0xf]
        %v231 = vld [vmem:[#allocation7 + $0x24] sm:$0xff]
        %v232 = vld [vmem:[#allocation7 + $0x2c] sm:$0xf]
        %v233 = vld [vmem:[#allocation7 + $0x30] sm:$0xff]
        %v234 = vld [vmem:[#allocation7 + $0x38] sm:$0xf]
        %v235 = vld [vmem:[#allocation7 + $0x3c] sm:$0xff]
        %v236 = vld [vmem:[#allocation7 + $0x44] sm:$0xf]
        %v237 = vld [vmem:[#allocation7 + $0x48] sm:$0xff]
        %v238 = vld [vmem:[#allocation7 + $0x50] sm:$0xf]
        %v239 = vld [vmem:[#allocation7 + $0x54] sm:$0xff]
        %v240 = vld [vmem:[#allocation7 + $0x5c] sm:$0xf]
        %v241 = vld [vmem:[#allocation7 + $0x60] sm:$0xff]
        %v242 = vld [vmem:[#allocation7 + $0x68] sm:$0xf]
        %v243 = vld [vmem:[#allocation7 + $0x6c] sm:$0xff]
        %v244 = vld [vmem:[#allocation7 + $0x74] sm:$0xf]
        %v245 = vld [vmem:[#allocation7 + $0x78] sm:$0xff]
        %v246 = vld [vmem:[#allocation7 + $0x80] sm:$0xf]
        %v247 = vld [vmem:[#allocation7 + $0x84] sm:$0xff]
        %v248 = vld [vmem:[#allocation7 + $0x8c] sm:$0xf]
        %v249 = vld [vmem:[#allocation7 + $0x90] sm:$0xff]
        %v250 = vld [vmem:[#allocation7 + $0x98] sm:$0xf]
        %v251 = vld [vmem:[#allocation7 + $0x9c] sm:$0xff]
        %v252 = vld [vmem:[#allocation7 + $0xa4] sm:$0xf]
        %v253 = vld [vmem:[#allocation7 + $0xa8] sm:$0xff]
        %v254 = vld [vmem:[#allocation7 + $0xb0] sm:$0xf]
        %v255 = vld [vmem:[#allocation7 + $0xb4] sm:$0xff]
        %v256 = vld [vmem:[#allocation7 + $0xbc] sm:$0xf]
        %v259 = vunpack.c.l.b16 %v223
        %v260 = vunpack.c.l.b16 %v224
        %v261 = vpack.c.b16 %v260, %v259
        %v295 = vunpack.c.l.b16 %v225
        %v296 = vunpack.c.h.b16 %v225
        %v297 = vunpack.c.l.b16 %v226
        %v298 = vunpack.c.l.b16 %v227
        %v299 = vunpack.c.h.b16 %v227
        %v300 = vunpack.c.l.b16 %v228
        %v301 = vunpack.c.l.b16 %v229
        %v302 = vunpack.c.h.b16 %v229
        %v303 = vunpack.c.l.b16 %v230
        %v304 = vunpack.c.l.b16 %v231
        %v305 = vunpack.c.h.b16 %v231
        %v306 = vunpack.c.l.b16 %v232
        %v307 = vunpack.c.l.b16 %v233
        %v308 = vunpack.c.h.b16 %v233
        %v309 = vunpack.c.l.b16 %v234
        %v310 = vunpack.c.l.b16 %v235
        %v311 = vunpack.c.h.b16 %v235
        %v312 = vunpack.c.l.b16 %v236
        %v313 = vunpack.c.l.b16 %v237
        %v314 = vunpack.c.h.b16 %v237
        %v315 = vunpack.c.l.b16 %v238
        %v316 = vunpack.c.l.b16 %v239
        %v317 = vunpack.c.h.b16 %v239
        %v318 = vunpack.c.l.b16 %v240
        %v319 = vunpack.c.l.b16 %v241
        %v320 = vunpack.c.h.b16 %v241
        %v321 = vunpack.c.l.b16 %v242
        %v322 = vunpack.c.l.b16 %v243
        %v323 = vunpack.c.h.b16 %v243
        %v324 = vunpack.c.l.b16 %v244
        %v325 = vunpack.c.l.b16 %v245
        %v326 = vunpack.c.h.b16 %v245
        %v327 = vunpack.c.l.b16 %v246
        %v328 = vunpack.c.l.b16 %v247
        %v329 = vunpack.c.h.b16 %v247
        %v330 = vunpack.c.l.b16 %v248
        %v331 = vunpack.c.l.b16 %v249
        %v332 = vunpack.c.h.b16 %v249
        %v333 = vunpack.c.l.b16 %v250
        %v334 = vunpack.c.l.b16 %v251
        %v335 = vunpack.c.h.b16 %v251
        %v336 = vunpack.c.l.b16 %v252
        %v337 = vunpack.c.l.b16 %v253
        %v338 = vunpack.c.h.b16 %v253
        %v339 = vunpack.c.l.b16 %v254
        %v340 = vunpack.c.l.b16 %v255
        %v341 = vunpack.c.h.b16 %v255
        %v342 = vunpack.c.l.b16 %v256
        %v343 = vpack.c.b16 %v298, %v295
        %v344 = vpack.c.b16 %v299, %v296
        %v345 = vpack.c.b16 %v300, %v297
        %v346 = vpack.c.b16 %v304, %v301
        %v347 = vpack.c.b16 %v305, %v302
        %v348 = vpack.c.b16 %v306, %v303
        %v349 = vpack.c.b16 %v310, %v307
        %v350 = vpack.c.b16 %v311, %v308
        %v351 = vpack.c.b16 %v312, %v309
        %v352 = vpack.c.b16 %v316, %v313
        %v353 = vpack.c.b16 %v317, %v314
        %v354 = vpack.c.b16 %v318, %v315
        %v355 = vpack.c.b16 %v322, %v319
        %v356 = vpack.c.b16 %v323, %v320
        %v357 = vpack.c.b16 %v324, %v321
        %v358 = vpack.c.b16 %v328, %v325
        %v359 = vpack.c.b16 %v329, %v326
        %v360 = vpack.c.b16 %v330, %v327
        %v361 = vpack.c.b16 %v334, %v331
        %v362 = vpack.c.b16 %v335, %v332
        %v363 = vpack.c.b16 %v336, %v333
        %v364 = vpack.c.b16 %v340, %v337
        %v365 = vpack.c.b16 %v341, %v338
        %v366 = vpack.c.b16 %v342, %v339
        %391 = vmatprep.subr.bf16.mxu0 %v344
        %392 = vmatpush1.bf16.msra.mxu0 %v343
        %393 = vmatprep.subr.bf16.mxu0 %v347
        %394 = vmatpush1.bf16.msra.mxu0 %v346
        %395 = vmatprep.subr.bf16.mxu0 %v350
        %396 = vmatpush1.bf16.msra.mxu0 %v349
        %397 = vmatprep.subr.bf16.mxu0 %v353
        %398 = vmatpush1.bf16.msra.mxu0 %v352
        %399 = vmatprep.subr.bf16.mxu0 %v356
        %400 = vmatpush1.bf16.msra.mxu0 %v355
        %401 = vmatprep.subr.bf16.mxu0 %v359
        %402 = vmatpush1.bf16.msra.mxu0 %v358
        %403 = vmatprep.subr.bf16.mxu0 %v362
        %404 = vmatpush1.bf16.msra.mxu0 %v361
        %405 = vmatprep.subr.bf16.mxu0 %v365
        %406 = vmatpush1.bf16.msra.mxu0 %v364
        %407 = vmatprep.subr.bf16.mxu0 0
        %408 = vmatpush1.bf16.msra.mxu0 0
        %409 = vmatprep.subr.bf16.mxu0 0
        %410 = vmatpush1.bf16.msra.mxu0 0
        %411 = vmatprep.subr.bf16.mxu0 0
        %412 = vmatpush1.bf16.msra.mxu0 0
        %413 = vmatprep.subr.bf16.mxu0 0
        %414 = vmatpush1.bf16.msra.mxu0 0
        %415 = vmatprep.subr.bf16.mxu0 0
        %416 = vmatpush1.bf16.msra.mxu0 0
        %417 = vmatprep.subr.bf16.mxu0 0
        %418 = vmatpush1.bf16.msra.mxu0 0
        %419 = vmatprep.subr.bf16.mxu0 0
        %420 = vmatpush1.bf16.msra.mxu0 0
        %421 = vmatprep.subr.bf16.mxu0 0
        %422 = vmatpush1.bf16.msra.mxu0 0
        %423 = vmatprep.mubr.bf16.mxu0 0
        %424 = vmatmul.mubr.bf16.gmra.mrb[0].mxu0 %v261
        %v425 = vpop.f32.mrb[0].mxu0
        %v426 = vadd.f32 0.0, %v425
        %v427 = vpop.f32.mrb[0].mxu0
        %v428 = vadd.f32 0.0, %v427
        %v429 = vpop.f32.mrb[0].mxu0
        %v430 = vadd.f32 0.0, %v429
        %v431 = vpop.f32.mrb[0].mxu0
        %v432 = vadd.f32 0.0, %v431
        %433 = vdwg.mxu0
        %434 = vmatprep.subr.bf16.mxu0 0
        %435 = vmatpush1.bf16.msra.mxu0 %v345
        %436 = vmatprep.subr.bf16.mxu0 0
        %437 = vmatpush1.bf16.msra.mxu0 %v348
        %438 = vmatprep.subr.bf16.mxu0 0
        %439 = vmatpush1.bf16.msra.mxu0 %v351
        %440 = vmatprep.subr.bf16.mxu0 0
        %441 = vmatpush1.bf16.msra.mxu0 %v354
        %442 = vmatprep.subr.bf16.mxu0 0
        %443 = vmatpush1.bf16.msra.mxu0 %v357
        %444 = vmatprep.subr.bf16.mxu0 0
        %445 = vmatpush1.bf16.msra.mxu0 %v360
        %446 = vmatprep.subr.bf16.mxu0 0
        %447 = vmatpush1.bf16.msra.mxu0 %v363
        %448 = vmatprep.subr.bf16.mxu0 0
        %449 = vmatpush1.bf16.msra.mxu0 %v366
        %450 = vmatprep.subr.bf16.mxu0 0
        %451 = vmatpush1.bf16.msra.mxu0 0
        %452 = vmatprep.subr.bf16.mxu0 0
        %453 = vmatpush1.bf16.msra.mxu0 0
        %454 = vmatprep.subr.bf16.mxu0 0
        %455 = vmatpush1.bf16.msra.mxu0 0
        %456 = vmatprep.subr.bf16.mxu0 0
        %457 = vmatpush1.bf16.msra.mxu0 0
        %458 = vmatprep.subr.bf16.mxu0 0
        %459 = vmatpush1.bf16.msra.mxu0 0
        %460 = vmatprep.subr.bf16.mxu0 0
        %461 = vmatpush1.bf16.msra.mxu0 0
        %462 = vmatprep.subr.bf16.mxu0 0
        %463 = vmatpush1.bf16.msra.mxu0 0
        %464 = vmatprep.subr.bf16.mxu0 0
        %465 = vmatpush1.bf16.msra.mxu0 0
        %466 = vmatprep.mubr.bf16.mxu0 0
        %467 = vmatmul.mubr.bf16.gmra.mrb[0].mxu0 %v261
        %v468 = vpop.f32.mrb[0].mxu0
        %v469 = vadd.f32 0.0, %v468
        %v470 = vpop.f32.mrb[0].mxu0
        %v471 = vpop.f32.mrb[0].mxu0
        %v472 = vadd.f32 0.0, %v471
        %v473 = vpop.f32.mrb[0].mxu0
        %474 = vdwg.mxu0
        %v475 = vpack.c.bf16 %v430, %v426
        %v476 = vpack.c.bf16 %v432, %v428
        %v477 = vpack.c.bf16 %v472, %v469
        %478 = vmatprep.subr.bf16.mxu0 0
        %479 = vmatpush1.bf16.xpose.msra.mxu0 %v475
        %480 = vmatprep.subr.bf16.mxu0 0
        %481 = vmatpush1.bf16.xpose.msra.mxu0 0
        %482 = vmatprep.subr.bf16.mxu0 0
        %483 = vmatpush1.bf16.xpose.msra.mxu0 0
        %484 = vmatprep.subr.bf16.mxu0 0
        %485 = vmatpush1.bf16.xpose.msra.mxu0 0
        %486 = vmatprep.subr.bf16.mxu0 0
        %487 = vmatpush1.bf16.xpose.msra.mxu0 0
        %488 = vmatprep.subr.bf16.mxu0 0
        %489 = vmatpush1.bf16.xpose.msra.mxu0 0
        %490 = vmatprep.subr.bf16.mxu0 0
        %491 = vmatpush1.bf16.xpose.msra.mxu0 0
        %492 = vmatprep.subr.bf16.mxu0 0
        %493 = vmatpush1.bf16.xpose.msra.mxu0 0
        %494 = vmatprep.subr.bf16.mxu0 0
        %495 = vmatpush1.bf16.xpose.msra.mxu0 0
        %496 = vmatprep.subr.bf16.mxu0 0
        %497 = vmatpush1.bf16.xpose.msra.mxu0 0
        %498 = vmatprep.subr.bf16.mxu0 0
        %499 = vmatpush1.bf16.xpose.msra.mxu0 0
        %500 = vmatprep.subr.bf16.mxu0 0
        %501 = vmatpush1.bf16.xpose.msra.mxu0 0
        %502 = vmatprep.subr.bf16.mxu0 0
        %503 = vmatpush1.bf16.xpose.msra.mxu0 0
        %504 = vmatprep.subr.bf16.mxu0 0
        %505 = vmatpush1.bf16.xpose.msra.mxu0 0
        %506 = vmatprep.subr.bf16.mxu0 0
        %507 = vmatpush1.bf16.xpose.msra.mxu0 0
        %508 = vmatprep.subr.bf16.mxu0 0
        %509 = vmatpush1.bf16.xpose.msra.mxu0 0
        %510 = vmatprep.mubr.bf16.mxu0 0
        %511 = vmatmul.mubr.bf16.gmra.mrb[0].mxu0 %v476
        %v512 = vpop.f32.mrb[0].mxu0
        %v513 = vadd.f32 0.0, %v512
        %v514 = vpop.f32.mrb[0].mxu0
        %v515 = vpop.f32.mrb[0].mxu0
        %v516 = vadd.f32 0.0, %v515
        %v517 = vpop.f32.mrb[0].mxu0
        %518 = vdwg.mxu0
        %v519 = vmul.f32 %v513, 0.088388346
        %v520 = vmul.f32 %v516, 0.088388346
        %v521 = vlaneseq
        %v522 = vshrl.u32 %v521, 7
        %v523 = vadd.s32 %v522, 8
        %v524 = vlaneseq
        %v525 = vand.u32 %v524, 127
        %vm526 = vcmp.ge.s32.totalorder %v522, %v525
        %vm527 = vcmp.ge.s32.totalorder %v523, %v525
        %v528 = vsel %vm526, %v519, -inf
        %v529 = vsel %vm527, %v520, -inf
        %vm530 = vcmask 130048
        %v531 = vsel %vm530, %v528, -inf
        %532 = vmax.xlane.f32.xlu0 %v531
        %v533 = vpop.xlane.xlu0 %532
        %v534 = vsel %vm530, %v529, -inf
        %535 = vmax.xlane.f32.xlu0 %v534
        %v536 = vpop.xlane.xlu0 %535
        %v537 = vsub.f32 %v528, %v533
        %v538 = vsub.f32 %v529, %v536
        %v539 = vmul.f32 %v537, 1.442695
        %v540 = vpow.pop %v539
        %v541 = vmul.f32 %v538, 1.442695
        %v542 = vpow.pop %v541
        %v543 = vsel %vm530, %v540, 0.0
        %544 = vadd.xlane.f32.xlu0 %v543
        %v545 = vpop.xlane.xlu0 %544
        %v546 = vsel %vm530, %v542, 0.0
        %547 = vadd.xlane.f32.xlu0 %v546
        %v548 = vpop.xlane.xlu0 %547
        %v549 = vrcp.pop %v545
        %v550 = vrcp.pop %v548
        %v551 = vmul.f32 %v540, %v549
        %v552 = vmul.f32 %v542, %v550
        %v553 = vpack.c.bf16 %v552, %v551
        %v555 = vsel %vm530, %v553, 0
        %557 = vmatprep.subr.bf16.mxu0 0
        %558 = vmatpush1.bf16.msra.mxu0 %v477
        %559 = vmatprep.subr.bf16.mxu0 0
        %560 = vmatpush1.bf16.msra.mxu0 0
        %561 = vmatprep.subr.bf16.mxu0 0
        %562 = vmatpush1.bf16.msra.mxu0 0
        %563 = vmatprep.subr.bf16.mxu0 0
        %564 = vmatpush1.bf16.msra.mxu0 0
        %565 = vmatprep.subr.bf16.mxu0 0
        %566 = vmatpush1.bf16.msra.mxu0 0
        %567 = vmatprep.subr.bf16.mxu0 0
        %568 = vmatpush1.bf16.msra.mxu0 0
        %569 = vmatprep.subr.bf16.mxu0 0
        %570 = vmatpush1.bf16.msra.mxu0 0
        %571 = vmatprep.subr.bf16.mxu0 0
        %572 = vmatpush1.bf16.msra.mxu0 0
        %573 = vmatprep.subr.bf16.mxu0 0
        %574 = vmatpush1.bf16.msra.mxu0 0
        %575 = vmatprep.subr.bf16.mxu0 0
        %576 = vmatpush1.bf16.msra.mxu0 0
        %577 = vmatprep.subr.bf16.mxu0 0
        %578 = vmatpush1.bf16.msra.mxu0 0
        %579 = vmatprep.subr.bf16.mxu0 0
        %580 = vmatpush1.bf16.msra.mxu0 0
        %581 = vmatprep.subr.bf16.mxu0 0
        %582 = vmatpush1.bf16.msra.mxu0 0
        %583 = vmatprep.subr.bf16.mxu0 0
        %584 = vmatpush1.bf16.msra.mxu0 0
        %585 = vmatprep.subr.bf16.mxu0 0
        %586 = vmatpush1.bf16.msra.mxu0 0
        %587 = vmatprep.subr.bf16.mxu0 0
        %588 = vmatpush1.bf16.msra.mxu0 0
        %589 = vmatprep.mubr.bf16.mxu0 0
        %590 = vmatmul.mubr.bf16.gmra.mrb[0].mxu0 %v555
        %v591 = vpop.f32.mrb[0].mxu0
        %v592 = vadd.f32 0.0, %v591
        %v593 = vpop.f32.mrb[0].mxu0
        %v594 = vpop.f32.mrb[0].mxu0
        %v595 = vadd.f32 0.0, %v594
        %v596 = vpop.f32.mrb[0].mxu0
        %597 = vdwg.mxu0
        %v598 = vpack.c.bf16 %v595, %v592
        %v600 = vunpack.c.l.b16 %v598
        %v601 = vunpack.c.h.b16 %v598
        %v602 = vpack.c.b16 %v600, %v600
        %v603 = vpack.c.b16 %v601, %v601
        %606 = vst [vmem:[%s217] sm:$0xf] %v602
        %607 = vst [vmem:[%s217 + $0x4] sm:$0xf] %v603
        %s608 = sand.u32 %s97, 1
        %s609 = scalar_lea.sflag [#allocation4], %s608
        %s610 = sand.u32 %s97, 1
        %s611 = smul.addr %s610, 8
        %s612 = scalar_lea.vmem [#allocation8], %s611
        // Predicated region
        $region45: #{tpu_custom_call.1} parent=31 // pred_check
          %p613 = pneg %p107
        $region46: #{tpu_custom_call.1} parent=31 // pred_check_branch
          %615 = sbr.rel (%p613) target = $region48
        $region47: #{tpu_custom_call.1} parent=31 // pred_region
          %s617 = ssub.s32 128, 128
          %618 = vsyncadd %s609, %s617
          %s619 = smul.addr %s21, 2
          %s620 = smul.addr %s619, 64
          %s621 = scalar_lea.hbm %s3, %s620
          %s622 = sshll.u32 %s612, 4
          %s623 = int_to_ptr.vmem [resolvable:$true] %s622
          %628 = dma.vmem_to_hbm [thread:$0]  %s623, 128, %s621, %s609, 64, 64, 4
        $region48: #{tpu_custom_call.1} parent=31 // pred_fallthru
          _
      $region32: #{tpu_custom_call.1} parent=5 // pred_fallthru
        _
      %p629 = scmp.le.s32.totalorder 2, %s16
      // Predicated region
      $region49: #{tpu_custom_call.1} parent=5 // pred_check
        %p630 = pneg %p629
      $region50: #{tpu_custom_call.1} parent=5 // pred_check_branch
        %632 = sbr.rel (%p630) target = $region52
      $region51: #{tpu_custom_call.1} parent=5 // pred_region
        %s633 = ssub.s32 %s16, 2
        // Predicated region
        $region53: #{tpu_custom_call.1} parent=51 // pred_check
          %p634 = pneg %p113
        $region54: #{tpu_custom_call.1} parent=51 // pred_check_branch
          %636 = sbr.rel (%p634) target = $region56
        $region55: #{tpu_custom_call.1} parent=51 // pred_region
          %s637 = sand.u32 %s98, 1
          %s638 = scalar_lea.sflag [#allocation4], %s637
          %s639 = sand.u32 %s98, 1
          %s640 = smul.addr %s639, 8
          %s641 = scalar_lea.vmem [#allocation8], %s640
          %642 = dma.done %s638, 128
        $region56: #{tpu_custom_call.1} parent=51 // pred_fallthru
          _
      $region52: #{tpu_custom_call.1} parent=5 // pred_fallthru
        _
    $region6: #{tpu_custom_call.1} parent=1 // loop_footer
      %s20 = sadd.s32 1, %s16
    $region7: #{tpu_custom_call.1} parent=1 // loop_footer_branch
      %15 = sbr.rel target = $region3
    $region8: #{tpu_custom_call.1} parent=1 // loop_exit
      _
    %643 = vsyncpa [#allocation3], 1
    %s644 = scalar_lea.sflag [#allocation3], 1
    %645 = vsyncpa %s644, 1
    %646 = vsyncpa [#allocation6], 1
    %647 = vsyncpa [#allocation4], 1
    %s648 = scalar_lea.sflag [#allocation4], 1
    %649 = vsyncpa %s648, 1

</llo_original>
